<compile_context>
chip_gen: v7x
topology: tpu7x:2x2x1
jax: 0.10.0
libtpu: 0.0.40
codegen_flags: <defaults>
</compile_context>

<pallas_src>
import random
from functools import partial

import jax
import jax.numpy as jnp
from jax.experimental import pallas as pl
from jax.experimental.pallas import tpu as pltpu

_NEG = -1e30  # additive mask for out-of-group lanes (argmax masking)


# ----------------------------------------------------------------------------
# Shared in-kernel math helpers
# ----------------------------------------------------------------------------
def _gate_mask(shape, H):
    lane = jax.lax.broadcasted_iota(jnp.int32, shape, 1)
    return (lane >= 2 * H) & (lane < 3 * H)


def _lstm_update(gates, c, is_g, H):
    # Single transcendental pass: sigmoid(x) = 0.5 * (1 + tanh(x / 2)).
    scaled = jnp.where(is_g, gates, 0.5 * gates)
    t = jnp.tanh(scaled)
    act = jnp.where(is_g, t, 0.5 * (t + 1.0))
    i_g = act[:, 0:H]
    f_g = act[:, H:2 * H]
    g_g = act[:, 2 * H:3 * H]
    o_g = act[:, 3 * H:4 * H]
    c_new = f_g * c + i_g * g_g
    h_new = o_g * jnp.tanh(c_new)
    return h_new, c_new


def _group_argmax(logits, lane, abias, tbias, P):
    """Per-row first-max lane index inside the action / target lane groups."""
    a_masked = logits + abias
    t_masked = logits + tbias
    m_a = jnp.max(a_masked, axis=1, keepdims=True)
    m_t = jnp.max(t_masked, axis=1, keepdims=True)
    ia = jnp.min(jnp.where(a_masked == m_a, lane, P), axis=1, keepdims=True)
    it = jnp.min(jnp.where(t_masked == m_t, lane, P), axis=1, keepdims=True)
    return ia, it


# ----------------------------------------------------------------------------
# Encoder kernel: embedding+input-projection folded host-side; only the h@whh
# recurrence runs in-kernel.
# ----------------------------------------------------------------------------
def _encoder_kernel(gx_ref, whh_ref, h_out_ref, c_out_ref, *, T, B, H):
    is_g = _gate_mask((B, 4 * H), H)  # hoisted out of the time loop
    h = jnp.zeros((B, H), jnp.float32)
    c = jnp.zeros((B, H), jnp.float32)
    # TODO(synk): switch to lax.fori_loop with gx staged via pl.ds slices once
    # T*B*4H exceeds ~32-48 vregs (here it is only T = 8 vregs).
    for t in range(T):
        gates = gx_ref[t * B:(t + 1) * B, :] + jnp.dot(
            h, whh_ref[...], preferred_element_type=jnp.float32)
        h, c = _lstm_update(gates, c, is_g, H)
    h_out_ref[...] = h
    c_out_ref[...] = c


def encoder_forward(gx2d, whh, *, T, B, H):
    vspec = pl.BlockSpec(memory_space=pltpu.MemorySpace.VMEM)
    return pl.pallas_call(
        partial(_encoder_kernel, T=T, B=B, H=H),
        out_shape=(jax.ShapeDtypeStruct((B, H), jnp.float32),
                   jax.ShapeDtypeStruct((B, H), jnp.float32)),
        in_specs=[vspec, vspec],
        out_specs=(vspec, vspec),
    )(gx2d, whh)


# ----------------------------------------------------------------------------
# Decoder: fused greedy-decode (eval path), grid=(steps,), state in VMEM scratch
# ----------------------------------------------------------------------------
def _decoder_eval_kernel(feed0_ref, h0_ref, c0_ref, wbig_ref, b_ref, whead_ref,
                         bhead_ref, lane_ref, abias_ref, tbias_ref,
                         out_ref, fh_sc, c_sc, *, P, H):
    s = pl.program_id(0)
    Bp = fh_sc.shape[0]

    @pl.when(s == 0)
    def _():
        fh_sc[...] = jnp.zeros_like(fh_sc)      # zero the K padding once
        fh_sc[:, 0:P] = feed0_ref[...]
        fh_sc[:, P:P + H] = h0_ref[...]
        c_sc[...] = c0_ref[...]

    # ONE merged matmul per step: [feed | h | 0] @ [W_feed ; W_hh ; 0] + b
    gates = jnp.dot(fh_sc[...], wbig_ref[...],
                    preferred_element_type=jnp.float32) + b_ref[...]
    is_g = _gate_mask(gates.shape, H)
    h_new, c_new = _lstm_update(gates, c_sc[...], is_g, H)
    c_sc[...] = c_new

    logits = jnp.dot(h_new, whead_ref[...],
                     preferred_element_type=jnp.float32) + bhead_ref[...]

    lane = lane_ref[...]                        # resident (1, P) iota constant
    ia, it = _group_argmax(logits, lane, abias_ref[...], tbias_ref[...], P)

    # Faithful to torch's `pred[:, idx] = 1`: identical multi-hot for every row,
    # stored once as a (1, P) block; the batch broadcast happens on the host.
    hit = ((lane == ia) | (lane == it)).astype(jnp.float32)     # (Bp, P)
    out_ref[0] = jnp.max(hit, axis=0, keepdims=True)            # (1, P)

    # Feedback token for the next step = argmax of the multi-hot = smallest set lane.
    fa = jnp.min(ia, axis=0, keepdims=True)                     # (1, 1)
    ft = jnp.min(it, axis=0, keepdims=True)
    feed_next = ((lane == fa) | (lane == ft)).astype(jnp.float32)  # (1, P)
    fh_sc[:, 0:P] = jnp.broadcast_to(feed_next, (Bp, P))
    fh_sc[:, P:P + H] = h_new


def decoder_eval_fused(feed0, h0, c0, wbig, b, whead, bhead, lane, abias, tbias,
                       *, steps, P, H):
    Bp = feed0.shape[0]
    Kp = wbig.shape[0]
    full = lambda a: pl.BlockSpec(a.shape, lambda s, _nd=a.ndim: (0,) * _nd)
    grid_spec = pltpu.PrefetchScalarGridSpec(
        num_scalar_prefetch=0,
        grid=(steps,),
        in_specs=[full(feed0), full(h0), full(c0), full(wbig), full(b),
                  full(whead), full(bhead), full(lane), full(abias), full(tbias)],
        out_specs=pl.BlockSpec((1, 1, P), lambda s: (s, 0, 0)),
        scratch_shapes=[pltpu.VMEM((Bp, Kp), jnp.float32),   # [feed | h | 0-pad]
                        pltpu.VMEM((Bp, H), jnp.float32)],   # c
    )
    # TODO(synk): if steps grows past a handful, process U=4-8 steps per grid
    # iteration to amortize the ~0.35us per-grid-step overhead.
    return pl.pallas_call(
        partial(_decoder_eval_kernel, P=P, H=H),
        out_shape=jax.ShapeDtypeStruct((steps, 1, P), jnp.float32),
        grid_spec=grid_spec,
        compiler_params=pltpu.CompilerParams(dimension_semantics=("arbitrary",)),
    )(feed0, h0, c0, wbig, b, whead, bhead, lane, abias, tbias)


# ----------------------------------------------------------------------------
# Decoder: fused TRAINING decode, grid=(steps,), teacher-forcing flags prefetched
# into SMEM (pre-sampled on the host with random.random(), same order as original)
# ----------------------------------------------------------------------------
def _decoder_train_kernel(tf_ref, teacher_ref, h0_ref, c0_ref, wbig_ref, b_ref,
                          whead_ref, bhead_ref, lane_ref, abias_ref, tbias_ref,
                          out_ref, fh_sc, c_sc, *, P, H):
    s = pl.program_id(0)

    @pl.when(s == 0)
    def _():
        fh_sc[...] = jnp.zeros_like(fh_sc)
        fh_sc[:, P:P + H] = h0_ref[...]
        c_sc[...] = c0_ref[...]

    # Teacher forcing: overwrite the model-feedback tokens (already sitting in
    # fh_sc[:, :P] from the previous step) with the label tokens.  The host
    # guarantees tf[0] == 1, so step 0 always uses the teacher feed.
    @pl.when(tf_ref[s] == 1)
    def _():
        fh_sc[:, 0:P] = teacher_ref[0]

    gates = jnp.dot(fh_sc[...], wbig_ref[...],
                    preferred_element_type=jnp.float32) + b_ref[...]
    is_g = _gate_mask(gates.shape, H)
    h_new, c_new = _lstm_update(gates, c_sc[...], is_g, H)
    c_sc[...] = c_new

    logits = jnp.dot(h_new, whead_ref[...],
                     preferred_element_type=jnp.float32) + bhead_ref[...]
    out_ref[0] = logits                                          # raw per-row logits

    # Model feedback for the next step: per-row argmax tokens as a packed two-hot.
    lane = lane_ref[...]
    ia, it = _group_argmax(logits, lane, abias_ref[...], tbias_ref[...], P)
    fh_sc[:, 0:P] = ((lane == ia) | (lane == it)).astype(jnp.float32)
    fh_sc[:, P:P + H] = h_new


def decoder_train_fused(tf_flags, teacher_all, h0, c0, wbig, b, whead, bhead,
                        lane, abias, tbias, *, steps, P, H):
    Bp = h0.shape[0]
    Kp = wbig.shape[0]
    full = lambda a: pl.BlockSpec(a.shape, lambda s, tf, _nd=a.ndim: (0,) * _nd)
    grid_spec = pltpu.PrefetchScalarGridSpec(
        num_scalar_prefetch=1,                   # tf_flags -> SMEM
        grid=(steps,),
        in_specs=[pl.BlockSpec((1, Bp, P), lambda s, tf: (s, 0, 0)),   # teacher feed
                  full(h0), full(c0), full(wbig), full(b),
                  full(whead), full(bhead), full(lane), full(abias), full(tbias)],
        out_specs=pl.BlockSpec((1, Bp, P), lambda s, tf: (s, 0, 0)),
        scratch_shapes=[pltpu.VMEM((Bp, Kp), jnp.float32),
                        pltpu.VMEM((Bp, H), jnp.float32)],
    )
    return pl.pallas_call(
        partial(_decoder_train_kernel, P=P, H=H),
        out_shape=jax.ShapeDtypeStruct((steps, Bp, P), jnp.float32),
        grid_spec=grid_spec,
        compiler_params=pltpu.CompilerParams(dimension_semantics=("arbitrary",)),
    )(tf_flags, teacher_all, h0, c0, wbig, b, whead, bhead, lane, abias, tbias)


# ----------------------------------------------------------------------------
# EncoderDecoder wrapper (mirrors the PyTorch forward)
# ----------------------------------------------------------------------------
class EncoderDecoderPallas:
    def __init__(self, params, actions_size, targets_size, batch_size,
                 teacher_forcing_prob):
        p = {k: jnp.asarray(v, jnp.float32) for k, v in params.items()}
        self.p = p
        self.actions_size = int(actions_size)
        self.targets_size = int(targets_size)
        self.batch_size = int(batch_size)
        self.teacher_forcing_prob = float(teacher_forcing_prob)

        self.hidden = H = p["dec_whh"].shape[0]
        self.emb_dim = E = p["dec_emb_a"].shape[1]
        A, Tg = self.actions_size, self.targets_size
        self.packed = P = -(-(A + Tg) // 128) * 128          # lane-dense width
        self.batch_pad = Bp = -(-self.batch_size // 8) * 8   # full sublane
        # Batch padded by REPLICATING real rows: duplicated rows contribute duplicate
        # argmax indices, so the multi-hot "bug" set is unchanged.  Do NOT switch to
        # zero-row padding.
        self._pad_idx = jnp.arange(Bp, dtype=jnp.int32) % self.batch_size

        # ---- one-time algebraic folds (plain JAX, host-side) ----
        # Encoder: fold embedding, input projection and bias into one gather table.
        self.enc_G = p["enc_emb"] @ p["enc_wih"] + p["enc_b"]        # (vocab, 4H)

        # Decoder: fold packed embedding into the input weight, then stack with whh
        # so the per-step recurrence is a single MXU matmul of [feed | h | 0-pad].
        emb_packed = jnp.zeros((P, 2 * E), jnp.float32)
        emb_packed = emb_packed.at[:A, :E].set(p["dec_emb_a"])
        emb_packed = emb_packed.at[A:A + Tg, E:].set(p["dec_emb_t"])
        w_feed = emb_packed @ jnp.concatenate(
            [p["dec_wih_a"], p["dec_wih_t"]], axis=0)                # (P, 4H)
        self.kp = Kp = -(-(P + H) // 128) * 128                      # pad K to 256
        self.dec_wbig = (jnp.zeros((Kp, 4 * H), jnp.float32)
                         .at[:P].set(w_feed)
                         .at[P:P + H].set(p["dec_whh"]))
        self.dec_b = p["dec_b"]

        # Packed heads: [W_action | W_target | 0-pad] -> single lane-dense matmul.
        self.dec_whead = (jnp.zeros((H, P), jnp.float32)
                          .at[:, :A].set(p["dec_wa"])
                          .at[:, A:A + Tg].set(p["dec_wt"]))
        self.dec_bhead = (jnp.zeros((1, P), jnp.float32)
                          .at[:, :A].set(p["dec_ba"])
                          .at[:, A:A + Tg].set(p["dec_bt"]))

        # Resident argmax helpers (no per-step iota / compare regeneration).
        lane = jnp.arange(P, dtype=jnp.int32)[None, :]
        self.lane_ids = lane
        self.a_bias = jnp.where(lane < A, 0.0, _NEG).astype(jnp.float32)
        self.t_bias = jnp.where((lane >= A) & (lane < A + Tg),
                                0.0, _NEG).astype(jnp.float32)

        # TODO(synk): optionally cast dec_wbig/dec_whead/enc_whh to bf16 MXU inputs
        # on v6e/v7x; kept f32 so argmax tie behaviour stays bit-identical.

    # encoder(instructions) -> (h_n, c_n), batch-padded to a full sublane
    def encoder(self, instructions):
        inst = jnp.asarray(instructions, jnp.int32)[self._pad_idx]   # (Bp, S)
        S = inst.shape[1]
        gx = jnp.take(self.enc_G, inst.T, axis=0)                    # (S, Bp, 4H)
        gx2d = gx.reshape(S * self.batch_pad, 4 * self.hidden)       # time-major
        return encoder_forward(gx2d, self.p["enc_whh"],
                               T=S, B=self.batch_pad, H=self.hidden)

    def _pack_tokens(self, a_tok, t_tok):
        A, Tg, P = self.actions_size, self.targets_size, self.packed
        a_oh = jax.nn.one_hot(jnp.asarray(a_tok, jnp.int32).reshape(-1), A,
                              dtype=jnp.float32)
        t_oh = jax.nn.one_hot(jnp.asarray(t_tok, jnp.int32).reshape(-1), Tg,
                              dtype=jnp.float32)
        packed = (jnp.zeros((a_oh.shape[0], P), jnp.float32)
                  .at[:, :A].set(a_oh).at[:, A:A + Tg].set(t_oh))
        return packed[self._pad_idx]                                 # (Bp, P)

    def _pack_teacher_all(self, labels, steps):
        A, Tg, P = self.actions_size, self.targets_size, self.packed
        a_tok = jnp.asarray(labels[:, 0::2], jnp.int32)              # (B, steps)
        t_tok = jnp.asarray(labels[:, 1::2], jnp.int32)
        a_oh = jax.nn.one_hot(a_tok, A, dtype=jnp.float32)           # (B, steps, A)
        t_oh = jax.nn.one_hot(t_tok, Tg, dtype=jnp.float32)
        packed = (jnp.zeros((self.batch_size, steps, P), jnp.float32)
                  .at[:, :, :A].set(a_oh).at[:, :, A:A + Tg].set(t_oh))
        packed = packed[self._pad_idx]                               # (Bp, steps, P)
        return jnp.transpose(packed, (1, 0, 2))                      # (steps, Bp, P)

    def forward(self, instructions, labels, training):
        h_n, c_n = self.encoder(instructions)
        labels = jnp.asarray(labels)
        steps = labels.shape[1] // 2
        A, Tg = self.actions_size, self.targets_size
        common = (self.dec_wbig, self.dec_b, self.dec_whead, self.dec_bhead,
                  self.lane_ids, self.a_bias, self.t_bias)

        if not training:
            # Entire greedy-decode loop fused into ONE pallas_call; log-softmax
            # dropped (argmax is invariant under it).
            feed0 = self._pack_tokens(labels[:, 0], labels[:, 1])
            packed = decoder_eval_fused(feed0, h_n, c_n, *common,
                                        steps=steps, P=self.packed, H=self.hidden)
            packed = packed[:, 0, :]                                 # (steps, P)
            pa = jnp.broadcast_to(packed[None, :, :A],
                                  (self.batch_size, steps, A))
            pt = jnp.broadcast_to(packed[None, :, A:A + Tg],
                                  (self.batch_size, steps, Tg))
            return pa, pt

        # Training: pre-sample the teacher-forcing coin flips on the host (same
        # count and order of random.random() draws as the original Python loop:
        # no draw at step 0), then run ONE fused pallas_call for all steps.
        tf = [1]
        for _ in range(1, steps):
            tf.append(1 if random.random() < self.teacher_forcing_prob else 0)
        tf_flags = jnp.asarray(tf, jnp.int32)
        teacher_all = self._pack_teacher_all(labels, steps)
        logits = decoder_train_fused(tf_flags, teacher_all, h_n, c_n, *common,
                                     steps=steps, P=self.packed, H=self.hidden)
        logits = jnp.transpose(logits, (1, 0, 2))[:self.batch_size]  # (B, steps, P)
        return logits[:, :, :A], logits[:, :, A:A + Tg]


# ----------------------------------------------------------------------------
# Deterministic parameter init + example run
# ----------------------------------------------------------------------------
def make_params(key, vocab, emb, hidden, actions_size, targets_size):
    ks = jax.random.split(key, 14)
    n = lambda k, s: (0.1 * jax.random.normal(k, s)).astype(jnp.float32)
    return {
        "enc_emb":   n(ks[0], (vocab, emb)),
        "enc_wih":   n(ks[1], (emb, 4 * hidden)),
        "enc_whh":   n(ks[2], (hidden, 4 * hidden)),
        "enc_b":     n(ks[3], (1, 4 * hidden)),
        "dec_emb_a": n(ks[4], (actions_size, emb)),
        "dec_emb_t": n(ks[5], (targets_size, emb)),
        "dec_wih_a": n(ks[6], (emb, 4 * hidden)),
        "dec_wih_t": n(ks[7], (emb, 4 * hidden)),
        "dec_whh":   n(ks[8], (hidden, 4 * hidden)),
        "dec_b":     n(ks[9], (1, 4 * hidden)),
        "dec_wa":    n(ks[10], (hidden, actions_size)),
        "dec_ba":    n(ks[11], (1, actions_size)),
        "dec_wt":    n(ks[12], (hidden, targets_size)),
        "dec_bt":    n(ks[13], (1, targets_size)),
    }


if __name__ == "__main__":
    B, S, E, H = 2, 8, 16, 32
    VOCAB, ACTIONS, TARGETS, STEPS = 20, 8, 10, 4

    key = jax.random.PRNGKey(0)
    kp, ki, ka, kt = jax.random.split(key, 4)
    params = make_params(kp, VOCAB, E, H, ACTIONS, TARGETS)

    instructions = jax.random.randint(ki, (B, S), 0, VOCAB, dtype=jnp.int32)
    act_labels = jax.random.randint(ka, (B, STEPS), 0, ACTIONS, dtype=jnp.int32)
    tgt_labels = jax.random.randint(kt, (B, STEPS), 0, TARGETS, dtype=jnp.int32)
    labels = jnp.stack([act_labels, tgt_labels], axis=2).reshape(B, 2 * STEPS)

    model = EncoderDecoderPallas(params, ACTIONS, TARGETS, B,
                                 teacher_forcing_prob=0.5)

    # Eval path: one encoder kernel + ONE fused greedy-decode kernel.
    all_pred_actions, all_pred_targets = model.forward(instructions, labels,
                                                       training=False)
    jax.block_until_ready(all_pred_actions)
    jax.block_until_ready(all_pred_targets)
    assert all_pred_actions.shape == (B, STEPS, ACTIONS)
    assert all_pred_targets.shape == (B, STEPS, TARGETS)
    # sanity: faithful multi-hot semantics (values in {0,1}, >=1 set, rows identical)
    assert bool(jnp.all((all_pred_actions == 0) | (all_pred_actions == 1)))
    assert bool(jnp.all(jnp.sum(all_pred_actions, axis=-1) >= 1))
    assert bool(jnp.all(jnp.sum(all_pred_targets, axis=-1) >= 1))
    assert bool(jnp.all(all_pred_actions[0] == all_pred_actions[1]))

    # Training path: one encoder kernel + ONE fused decode kernel with
    # host-pre-sampled teacher forcing.
    random.seed(0)
    tr_a, tr_t = model.forward(instructions, labels, training=True)
    jax.block_until_ready(tr_a)
    jax.block_until_ready(tr_t)
    assert tr_a.shape == (B, STEPS, ACTIONS)
    assert tr_t.shape == (B, STEPS, TARGETS)

    print("KERNEL_OK")
</pallas_src>

<mosaic_0001>
module attributes {stable_mosaic.version = 11 : i64} {
  func.func @_encoder_kernel(%arg0: memref<64x128xf32, #tpu.memory_space<vmem>>, %arg1: memref<32x128xf32, #tpu.memory_space<vmem>>, %arg2: memref<8x32xf32, #tpu.memory_space<vmem>>, %arg3: memref<8x32xf32, #tpu.memory_space<vmem>>) attributes {dimension_semantics = [], scalar_prefetch = 0 : i64, scratch_operands = 0 : i64, tpu.core_type = #tpu.core_type<tc>} {
    %0 = tpu.iota {dimensions = array<i32: 1>} : vector<8x128xi32>
    %c64_i32 = arith.constant 64 : i32
    %1 = vector.broadcast %c64_i32 : i32 to vector<8x128xi32>
    %2 = arith.cmpi sge, %0, %1 : vector<8x128xi32>
    %c96_i32 = arith.constant 96 : i32
    %3 = vector.broadcast %c96_i32 : i32 to vector<8x128xi32>
    %4 = arith.cmpi slt, %0, %3 : vector<8x128xi32>
    %5 = arith.andi %2, %4 : vector<8x128xi1>
    %cst = arith.constant 0.000000e+00 : f32
    %6 = vector.broadcast %cst : f32 to vector<8x32xf32>
    %cst_0 = arith.constant 0.000000e+00 : f32
    %7 = vector.broadcast %cst_0 : f32 to vector<8x32xf32>
    %c0 = arith.constant 0 : index
    %c0_1 = arith.constant 0 : index
    %8 = vector.load %arg0[%c0, %c0_1] : memref<64x128xf32, #tpu.memory_space<vmem>>, vector<8x128xf32>
    %c0_2 = arith.constant 0 : index
    %c0_3 = arith.constant 0 : index
    %9 = vector.load %arg1[%c0_2, %c0_3] : memref<32x128xf32, #tpu.memory_space<vmem>>, vector<32x128xf32>
    %cst_4 = arith.constant dense<0.000000e+00> : vector<8x128xf32>
    %10 = tpu.matmul %6, %9, %cst_4 {dimension_numbers = #tpu.dot_dimension_numbers<[1], [0], [0], [1], [0, 0, 1, 1], [], []>} : vector<8x32xf32>, vector<32x128xf32>, vector<8x128xf32> -> vector<8x128xf32>
    %11 = arith.addf %8, %10 : vector<8x128xf32>
    %cst_5 = arith.constant 5.000000e-01 : f32
    %12 = vector.broadcast %cst_5 : f32 to vector<8x128xf32>
    %13 = arith.mulf %12, %11 : vector<8x128xf32>
    %14 = arith.select %5, %11, %13 : vector<8x128xi1>, vector<8x128xf32>
    %15 = math.tanh %14 : vector<8x128xf32>
    %cst_6 = arith.constant 1.000000e+00 : f32
    %16 = vector.broadcast %cst_6 : f32 to vector<8x128xf32>
    %17 = arith.addf %15, %16 : vector<8x128xf32>
    %cst_7 = arith.constant 5.000000e-01 : f32
    %18 = vector.broadcast %cst_7 : f32 to vector<8x128xf32>
    %19 = arith.mulf %18, %17 : vector<8x128xf32>
    %20 = arith.select %5, %15, %19 : vector<8x128xi1>, vector<8x128xf32>
    %21 = vector.extract_strided_slice %20 {offsets = [0, 0], sizes = [8, 32], strides = [1, 1]} : vector<8x128xf32> to vector<8x32xf32>
    %22 = vector.extract_strided_slice %20 {offsets = [0, 32], sizes = [8, 32], strides = [1, 1]} : vector<8x128xf32> to vector<8x32xf32>
    %23 = vector.extract_strided_slice %20 {offsets = [0, 64], sizes = [8, 32], strides = [1, 1]} : vector<8x128xf32> to vector<8x32xf32>
    %24 = vector.extract_strided_slice %20 {offsets = [0, 96], sizes = [8, 32], strides = [1, 1]} : vector<8x128xf32> to vector<8x32xf32>
    %25 = arith.mulf %22, %7 : vector<8x32xf32>
    %26 = arith.mulf %21, %23 : vector<8x32xf32>
    %27 = arith.addf %25, %26 : vector<8x32xf32>
    %28 = math.tanh %27 : vector<8x32xf32>
    %29 = arith.mulf %24, %28 : vector<8x32xf32>
    %c8 = arith.constant 8 : index
    %c0_8 = arith.constant 0 : index
    %30 = vector.load %arg0[%c8, %c0_8] : memref<64x128xf32, #tpu.memory_space<vmem>>, vector<8x128xf32>
    %c0_9 = arith.constant 0 : index
    %c0_10 = arith.constant 0 : index
    %31 = vector.load %arg1[%c0_9, %c0_10] : memref<32x128xf32, #tpu.memory_space<vmem>>, vector<32x128xf32>
    %cst_11 = arith.constant dense<0.000000e+00> : vector<8x128xf32>
    %32 = tpu.matmul %29, %31, %cst_11 {dimension_numbers = #tpu.dot_dimension_numbers<[1], [0], [0], [1], [0, 0, 1, 1], [], []>} : vector<8x32xf32>, vector<32x128xf32>, vector<8x128xf32> -> vector<8x128xf32>
    %33 = arith.addf %30, %32 : vector<8x128xf32>
    %cst_12 = arith.constant 5.000000e-01 : f32
    %34 = vector.broadcast %cst_12 : f32 to vector<8x128xf32>
    %35 = arith.mulf %34, %33 : vector<8x128xf32>
    %36 = arith.select %5, %33, %35 : vector<8x128xi1>, vector<8x128xf32>
    %37 = math.tanh %36 : vector<8x128xf32>
    %cst_13 = arith.constant 1.000000e+00 : f32
    %38 = vector.broadcast %cst_13 : f32 to vector<8x128xf32>
    %39 = arith.addf %37, %38 : vector<8x128xf32>
    %cst_14 = arith.constant 5.000000e-01 : f32
    %40 = vector.broadcast %cst_14 : f32 to vector<8x128xf32>
    %41 = arith.mulf %40, %39 : vector<8x128xf32>
    %42 = arith.select %5, %37, %41 : vector<8x128xi1>, vector<8x128xf32>
    %43 = vector.extract_strided_slice %42 {offsets = [0, 0], sizes = [8, 32], strides = [1, 1]} : vector<8x128xf32> to vector<8x32xf32>
    %44 = vector.extract_strided_slice %42 {offsets = [0, 32], sizes = [8, 32], strides = [1, 1]} : vector<8x128xf32> to vector<8x32xf32>
    %45 = vector.extract_strided_slice %42 {offsets = [0, 64], sizes = [8, 32], strides = [1, 1]} : vector<8x128xf32> to vector<8x32xf32>
    %46 = vector.extract_strided_slice %42 {offsets = [0, 96], sizes = [8, 32], strides = [1, 1]} : vector<8x128xf32> to vector<8x32xf32>
    %47 = arith.mulf %44, %27 : vector<8x32xf32>
    %48 = arith.mulf %43, %45 : vector<8x32xf32>
    %49 = arith.addf %47, %48 : vector<8x32xf32>
    %50 = math.tanh %49 : vector<8x32xf32>
    %51 = arith.mulf %46, %50 : vector<8x32xf32>
    %c16 = arith.constant 16 : index
    %c0_15 = arith.constant 0 : index
    %52 = vector.load %arg0[%c16, %c0_15] : memref<64x128xf32, #tpu.memory_space<vmem>>, vector<8x128xf32>
    %c0_16 = arith.constant 0 : index
    %c0_17 = arith.constant 0 : index
    %53 = vector.load %arg1[%c0_16, %c0_17] : memref<32x128xf32, #tpu.memory_space<vmem>>, vector<32x128xf32>
    %cst_18 = arith.constant dense<0.000000e+00> : vector<8x128xf32>
    %54 = tpu.matmul %51, %53, %cst_18 {dimension_numbers = #tpu.dot_dimension_numbers<[1], [0], [0], [1], [0, 0, 1, 1], [], []>} : vector<8x32xf32>, vector<32x128xf32>, vector<8x128xf32> -> vector<8x128xf32>
    %55 = arith.addf %52, %54 : vector<8x128xf32>
    %cst_19 = arith.constant 5.000000e-01 : f32
    %56 = vector.broadcast %cst_19 : f32 to vector<8x128xf32>
    %57 = arith.mulf %56, %55 : vector<8x128xf32>
    %58 = arith.select %5, %55, %57 : vector<8x128xi1>, vector<8x128xf32>
    %59 = math.tanh %58 : vector<8x128xf32>
    %cst_20 = arith.constant 1.000000e+00 : f32
    %60 = vector.broadcast %cst_20 : f32 to vector<8x128xf32>
    %61 = arith.addf %59, %60 : vector<8x128xf32>
    %cst_21 = arith.constant 5.000000e-01 : f32
    %62 = vector.broadcast %cst_21 : f32 to vector<8x128xf32>
    %63 = arith.mulf %62, %61 : vector<8x128xf32>
    %64 = arith.select %5, %59, %63 : vector<8x128xi1>, vector<8x128xf32>
    %65 = vector.extract_strided_slice %64 {offsets = [0, 0], sizes = [8, 32], strides = [1, 1]} : vector<8x128xf32> to vector<8x32xf32>
    %66 = vector.extract_strided_slice %64 {offsets = [0, 32], sizes = [8, 32], strides = [1, 1]} : vector<8x128xf32> to vector<8x32xf32>
    %67 = vector.extract_strided_slice %64 {offsets = [0, 64], sizes = [8, 32], strides = [1, 1]} : vector<8x128xf32> to vector<8x32xf32>
    %68 = vector.extract_strided_slice %64 {offsets = [0, 96], sizes = [8, 32], strides = [1, 1]} : vector<8x128xf32> to vector<8x32xf32>
    %69 = arith.mulf %66, %49 : vector<8x32xf32>
    %70 = arith.mulf %65, %67 : vector<8x32xf32>
    %71 = arith.addf %69, %70 : vector<8x32xf32>
    %72 = math.tanh %71 : vector<8x32xf32>
    %73 = arith.mulf %68, %72 : vector<8x32xf32>
    %c24 = arith.constant 24 : index
    %c0_22 = arith.constant 0 : index
    %74 = vector.load %arg0[%c24, %c0_22] : memref<64x128xf32, #tpu.memory_space<vmem>>, vector<8x128xf32>
    %c0_23 = arith.constant 0 : index
    %c0_24 = arith.constant 0 : index
    %75 = vector.load %arg1[%c0_23, %c0_24] : memref<32x128xf32, #tpu.memory_space<vmem>>, vector<32x128xf32>
    %cst_25 = arith.constant dense<0.000000e+00> : vector<8x128xf32>
    %76 = tpu.matmul %73, %75, %cst_25 {dimension_numbers = #tpu.dot_dimension_numbers<[1], [0], [0], [1], [0, 0, 1, 1], [], []>} : vector<8x32xf32>, vector<32x128xf32>, vector<8x128xf32> -> vector<8x128xf32>
    %77 = arith.addf %74, %76 : vector<8x128xf32>
    %cst_26 = arith.constant 5.000000e-01 : f32
    %78 = vector.broadcast %cst_26 : f32 to vector<8x128xf32>
    %79 = arith.mulf %78, %77 : vector<8x128xf32>
    %80 = arith.select %5, %77, %79 : vector<8x128xi1>, vector<8x128xf32>
    %81 = math.tanh %80 : vector<8x128xf32>
    %cst_27 = arith.constant 1.000000e+00 : f32
    %82 = vector.broadcast %cst_27 : f32 to vector<8x128xf32>
    %83 = arith.addf %81, %82 : vector<8x128xf32>
    %cst_28 = arith.constant 5.000000e-01 : f32
    %84 = vector.broadcast %cst_28 : f32 to vector<8x128xf32>
    %85 = arith.mulf %84, %83 : vector<8x128xf32>
    %86 = arith.select %5, %81, %85 : vector<8x128xi1>, vector<8x128xf32>
    %87 = vector.extract_strided_slice %86 {offsets = [0, 0], sizes = [8, 32], strides = [1, 1]} : vector<8x128xf32> to vector<8x32xf32>
    %88 = vector.extract_strided_slice %86 {offsets = [0, 32], sizes = [8, 32], strides = [1, 1]} : vector<8x128xf32> to vector<8x32xf32>
    %89 = vector.extract_strided_slice %86 {offsets = [0, 64], sizes = [8, 32], strides = [1, 1]} : vector<8x128xf32> to vector<8x32xf32>
    %90 = vector.extract_strided_slice %86 {offsets = [0, 96], sizes = [8, 32], strides = [1, 1]} : vector<8x128xf32> to vector<8x32xf32>
    %91 = arith.mulf %88, %71 : vector<8x32xf32>
    %92 = arith.mulf %87, %89 : vector<8x32xf32>
    %93 = arith.addf %91, %92 : vector<8x32xf32>
    %94 = math.tanh %93 : vector<8x32xf32>
    %95 = arith.mulf %90, %94 : vector<8x32xf32>
    %c32 = arith.constant 32 : index
    %c0_29 = arith.constant 0 : index
    %96 = vector.load %arg0[%c32, %c0_29] : memref<64x128xf32, #tpu.memory_space<vmem>>, vector<8x128xf32>
    %c0_30 = arith.constant 0 : index
    %c0_31 = arith.constant 0 : index
    %97 = vector.load %arg1[%c0_30, %c0_31] : memref<32x128xf32, #tpu.memory_space<vmem>>, vector<32x128xf32>
    %cst_32 = arith.constant dense<0.000000e+00> : vector<8x128xf32>
    %98 = tpu.matmul %95, %97, %cst_32 {dimension_numbers = #tpu.dot_dimension_numbers<[1], [0], [0], [1], [0, 0, 1, 1], [], []>} : vector<8x32xf32>, vector<32x128xf32>, vector<8x128xf32> -> vector<8x128xf32>
    %99 = arith.addf %96, %98 : vector<8x128xf32>
    %cst_33 = arith.constant 5.000000e-01 : f32
    %100 = vector.broadcast %cst_33 : f32 to vector<8x128xf32>
    %101 = arith.mulf %100, %99 : vector<8x128xf32>
    %102 = arith.select %5, %99, %101 : vector<8x128xi1>, vector<8x128xf32>
    %103 = math.tanh %102 : vector<8x128xf32>
    %cst_34 = arith.constant 1.000000e+00 : f32
    %104 = vector.broadcast %cst_34 : f32 to vector<8x128xf32>
    %105 = arith.addf %103, %104 : vector<8x128xf32>
    %cst_35 = arith.constant 5.000000e-01 : f32
    %106 = vector.broadcast %cst_35 : f32 to vector<8x128xf32>
    %107 = arith.mulf %106, %105 : vector<8x128xf32>
    %108 = arith.select %5, %103, %107 : vector<8x128xi1>, vector<8x128xf32>
    %109 = vector.extract_strided_slice %108 {offsets = [0, 0], sizes = [8, 32], strides = [1, 1]} : vector<8x128xf32> to vector<8x32xf32>
    %110 = vector.extract_strided_slice %108 {offsets = [0, 32], sizes = [8, 32], strides = [1, 1]} : vector<8x128xf32> to vector<8x32xf32>
    %111 = vector.extract_strided_slice %108 {offsets = [0, 64], sizes = [8, 32], strides = [1, 1]} : vector<8x128xf32> to vector<8x32xf32>
    %112 = vector.extract_strided_slice %108 {offsets = [0, 96], sizes = [8, 32], strides = [1, 1]} : vector<8x128xf32> to vector<8x32xf32>
    %113 = arith.mulf %110, %93 : vector<8x32xf32>
    %114 = arith.mulf %109, %111 : vector<8x32xf32>
    %115 = arith.addf %113, %114 : vector<8x32xf32>
    %116 = math.tanh %115 : vector<8x32xf32>
    %117 = arith.mulf %112, %116 : vector<8x32xf32>
    %c40 = arith.constant 40 : index
    %c0_36 = arith.constant 0 : index
    %118 = vector.load %arg0[%c40, %c0_36] : memref<64x128xf32, #tpu.memory_space<vmem>>, vector<8x128xf32>
    %c0_37 = arith.constant 0 : index
    %c0_38 = arith.constant 0 : index
    %119 = vector.load %arg1[%c0_37, %c0_38] : memref<32x128xf32, #tpu.memory_space<vmem>>, vector<32x128xf32>
    %cst_39 = arith.constant dense<0.000000e+00> : vector<8x128xf32>
    %120 = tpu.matmul %117, %119, %cst_39 {dimension_numbers = #tpu.dot_dimension_numbers<[1], [0], [0], [1], [0, 0, 1, 1], [], []>} : vector<8x32xf32>, vector<32x128xf32>, vector<8x128xf32> -> vector<8x128xf32>
    %121 = arith.addf %118, %120 : vector<8x128xf32>
    %cst_40 = arith.constant 5.000000e-01 : f32
    %122 = vector.broadcast %cst_40 : f32 to vector<8x128xf32>
    %123 = arith.mulf %122, %121 : vector<8x128xf32>
    %124 = arith.select %5, %121, %123 : vector<8x128xi1>, vector<8x128xf32>
    %125 = math.tanh %124 : vector<8x128xf32>
    %cst_41 = arith.constant 1.000000e+00 : f32
    %126 = vector.broadcast %cst_41 : f32 to vector<8x128xf32>
    %127 = arith.addf %125, %126 : vector<8x128xf32>
    %cst_42 = arith.constant 5.000000e-01 : f32
    %128 = vector.broadcast %cst_42 : f32 to vector<8x128xf32>
    %129 = arith.mulf %128, %127 : vector<8x128xf32>
    %130 = arith.select %5, %125, %129 : vector<8x128xi1>, vector<8x128xf32>
    %131 = vector.extract_strided_slice %130 {offsets = [0, 0], sizes = [8, 32], strides = [1, 1]} : vector<8x128xf32> to vector<8x32xf32>
    %132 = vector.extract_strided_slice %130 {offsets = [0, 32], sizes = [8, 32], strides = [1, 1]} : vector<8x128xf32> to vector<8x32xf32>
    %133 = vector.extract_strided_slice %130 {offsets = [0, 64], sizes = [8, 32], strides = [1, 1]} : vector<8x128xf32> to vector<8x32xf32>
    %134 = vector.extract_strided_slice %130 {offsets = [0, 96], sizes = [8, 32], strides = [1, 1]} : vector<8x128xf32> to vector<8x32xf32>
    %135 = arith.mulf %132, %115 : vector<8x32xf32>
    %136 = arith.mulf %131, %133 : vector<8x32xf32>
    %137 = arith.addf %135, %136 : vector<8x32xf32>
    %138 = math.tanh %137 : vector<8x32xf32>
    %139 = arith.mulf %134, %138 : vector<8x32xf32>
    %c48 = arith.constant 48 : index
    %c0_43 = arith.constant 0 : index
    %140 = vector.load %arg0[%c48, %c0_43] : memref<64x128xf32, #tpu.memory_space<vmem>>, vector<8x128xf32>
    %c0_44 = arith.constant 0 : index
    %c0_45 = arith.constant 0 : index
    %141 = vector.load %arg1[%c0_44, %c0_45] : memref<32x128xf32, #tpu.memory_space<vmem>>, vector<32x128xf32>
    %cst_46 = arith.constant dense<0.000000e+00> : vector<8x128xf32>
    %142 = tpu.matmul %139, %141, %cst_46 {dimension_numbers = #tpu.dot_dimension_numbers<[1], [0], [0], [1], [0, 0, 1, 1], [], []>} : vector<8x32xf32>, vector<32x128xf32>, vector<8x128xf32> -> vector<8x128xf32>
    %143 = arith.addf %140, %142 : vector<8x128xf32>
    %cst_47 = arith.constant 5.000000e-01 : f32
    %144 = vector.broadcast %cst_47 : f32 to vector<8x128xf32>
    %145 = arith.mulf %144, %143 : vector<8x128xf32>
    %146 = arith.select %5, %143, %145 : vector<8x128xi1>, vector<8x128xf32>
    %147 = math.tanh %146 : vector<8x128xf32>
    %cst_48 = arith.constant 1.000000e+00 : f32
    %148 = vector.broadcast %cst_48 : f32 to vector<8x128xf32>
    %149 = arith.addf %147, %148 : vector<8x128xf32>
    %cst_49 = arith.constant 5.000000e-01 : f32
    %150 = vector.broadcast %cst_49 : f32 to vector<8x128xf32>
    %151 = arith.mulf %150, %149 : vector<8x128xf32>
    %152 = arith.select %5, %147, %151 : vector<8x128xi1>, vector<8x128xf32>
    %153 = vector.extract_strided_slice %152 {offsets = [0, 0], sizes = [8, 32], strides = [1, 1]} : vector<8x128xf32> to vector<8x32xf32>
    %154 = vector.extract_strided_slice %152 {offsets = [0, 32], sizes = [8, 32], strides = [1, 1]} : vector<8x128xf32> to vector<8x32xf32>
    %155 = vector.extract_strided_slice %152 {offsets = [0, 64], sizes = [8, 32], strides = [1, 1]} : vector<8x128xf32> to vector<8x32xf32>
    %156 = vector.extract_strided_slice %152 {offsets = [0, 96], sizes = [8, 32], strides = [1, 1]} : vector<8x128xf32> to vector<8x32xf32>
    %157 = arith.mulf %154, %137 : vector<8x32xf32>
    %158 = arith.mulf %153, %155 : vector<8x32xf32>
    %159 = arith.addf %157, %158 : vector<8x32xf32>
    %160 = math.tanh %159 : vector<8x32xf32>
    %161 = arith.mulf %156, %160 : vector<8x32xf32>
    %c56 = arith.constant 56 : index
    %c0_50 = arith.constant 0 : index
    %162 = vector.load %arg0[%c56, %c0_50] : memref<64x128xf32, #tpu.memory_space<vmem>>, vector<8x128xf32>
    %c0_51 = arith.constant 0 : index
    %c0_52 = arith.constant 0 : index
    %163 = vector.load %arg1[%c0_51, %c0_52] : memref<32x128xf32, #tpu.memory_space<vmem>>, vector<32x128xf32>
    %cst_53 = arith.constant dense<0.000000e+00> : vector<8x128xf32>
    %164 = tpu.matmul %161, %163, %cst_53 {dimension_numbers = #tpu.dot_dimension_numbers<[1], [0], [0], [1], [0, 0, 1, 1], [], []>} : vector<8x32xf32>, vector<32x128xf32>, vector<8x128xf32> -> vector<8x128xf32>
    %165 = arith.addf %162, %164 : vector<8x128xf32>
    %cst_54 = arith.constant 5.000000e-01 : f32
    %166 = vector.broadcast %cst_54 : f32 to vector<8x128xf32>
    %167 = arith.mulf %166, %165 : vector<8x128xf32>
    %168 = arith.select %5, %165, %167 : vector<8x128xi1>, vector<8x128xf32>
    %169 = math.tanh %168 : vector<8x128xf32>
    %cst_55 = arith.constant 1.000000e+00 : f32
    %170 = vector.broadcast %cst_55 : f32 to vector<8x128xf32>
    %171 = arith.addf %169, %170 : vector<8x128xf32>
    %cst_56 = arith.constant 5.000000e-01 : f32
    %172 = vector.broadcast %cst_56 : f32 to vector<8x128xf32>
    %173 = arith.mulf %172, %171 : vector<8x128xf32>
    %174 = arith.select %5, %169, %173 : vector<8x128xi1>, vector<8x128xf32>
    %175 = vector.extract_strided_slice %174 {offsets = [0, 0], sizes = [8, 32], strides = [1, 1]} : vector<8x128xf32> to vector<8x32xf32>
    %176 = vector.extract_strided_slice %174 {offsets = [0, 32], sizes = [8, 32], strides = [1, 1]} : vector<8x128xf32> to vector<8x32xf32>
    %177 = vector.extract_strided_slice %174 {offsets = [0, 64], sizes = [8, 32], strides = [1, 1]} : vector<8x128xf32> to vector<8x32xf32>
    %178 = vector.extract_strided_slice %174 {offsets = [0, 96], sizes = [8, 32], strides = [1, 1]} : vector<8x128xf32> to vector<8x32xf32>
    %179 = arith.mulf %176, %159 : vector<8x32xf32>
    %180 = arith.mulf %175, %177 : vector<8x32xf32>
    %181 = arith.addf %179, %180 : vector<8x32xf32>
    %182 = math.tanh %181 : vector<8x32xf32>
    %183 = arith.mulf %178, %182 : vector<8x32xf32>
    %c0_57 = arith.constant 0 : index
    %c0_58 = arith.constant 0 : index
    %184 = vector.load %arg2[%c0_57, %c0_58] : memref<8x32xf32, #tpu.memory_space<vmem>>, vector<8x32xf32>
    tpu.vector_store %arg2[%c0_57, %c0_58], %183 {strides = array<i32>} : memref<8x32xf32, #tpu.memory_space<vmem>>, vector<8x32xf32>,
    %c0_59 = arith.constant 0 : index
    %c0_60 = arith.constant 0 : index
    %185 = vector.load %arg3[%c0_59, %c0_60] : memref<8x32xf32, #tpu.memory_space<vmem>>, vector<8x32xf32>
    tpu.vector_store %arg3[%c0_59, %c0_60], %181 {strides = array<i32>} : memref<8x32xf32, #tpu.memory_space<vmem>>, vector<8x32xf32>,
    return
  }
}

</mosaic_0001>

<llo_original>
// kernel: tpu_custom_call.1
$region0: #{tpu_custom_call.1}
  #allocation0 [shape = 'u32[]', space=smem, size = 0x4, offset = 0x4, fixed_abs, tag = 'smem constant byte address 0x4 - core index']
  #allocation1 [shape = 'u32[144,128]{1,0:T(1,128)}', space=vmem, size = 0x12000, scoped, tag = 'internal scratch']
  %s0 = inlined_call_operand.hbm [shape: f32[64,128], index: 0, kind: input, shape index: {}]
  %s1 = inlined_call_operand.hbm [shape: f32[32,128], index: 1, kind: input, shape index: {}]
  %s2 = inlined_call_operand.hbm [shape: f32[8,32], index: 2, kind: output, shape index: {0}]
  %s3 = inlined_call_operand.hbm [shape: f32[8,32], index: 3, kind: output, shape index: {1}]
  %4 = xla_tuple %s2, %s3
  %s5 = sld [smem:[#allocation0]]
  $region34: #{tpu_custom_call.1} parent=0
    _
  %s7 = ssub.s32 1, %s5
  %s8 = scalar_select 0, %s7, %s5
  $region1: #{tpu_custom_call.1} parent=0
    #allocation2 [shape = 'u8[32768]{0}', space=vmem, size = 0x8000, scoped, tag = 'input window, operand 0, single buffered']
    #allocation3 [shape = 's32[1]{0}', space=sflag, size = 0x4, scoped, tag = 'scoped memory for tpu_custom_call.1']
    #allocation4 [shape = 's32[1]{0}', space=sflag, size = 0x4, scoped, tag = 'scoped memory for tpu_custom_call.1']
    #allocation5 [shape = 'u8[16384]{0}', space=vmem, size = 0x4000, scoped, tag = 'input window, operand 1, single buffered']
    #allocation6 [shape = 's32[1]{0}', space=sflag, size = 0x4, scoped, tag = 'scoped memory for tpu_custom_call.1']
    #allocation7 [shape = 'u8[4096]{0}', space=vmem, size = 0x1000, scoped, tag = 'output window, operand 0, single buffered']
    #allocation8 [shape = 'u8[4096]{0}', space=vmem, size = 0x1000, scoped, tag = 'output window, operand 1, single buffered']
    #allocation9 [shape = 's32[1]{0}', space=sflag, size = 0x4, scoped, tag = 'scoped memory for tpu_custom_call.1']
    %9 = vsyncpa [#allocation3], 0
    %10 = vsyncpa [#allocation6], 0
    %11 = vsyncpa [#allocation4], 0
    %12 = vsyncpa [#allocation9], 0
    // Predicated region
    $region2: #{tpu_custom_call.1} parent=1 // pred_check
      _
    $region3: #{tpu_custom_call.1} parent=1 // pred_check_branch
      %14 = sbr.rel (0) target = $region5
    $region4: #{tpu_custom_call.1} parent=1 // pred_region
      %s16 = ssub.s32 1024, 1024
      %17 = vsyncadd [#allocation3], %s16
      %s18 = sshll.u32 [#allocation2], 4
      %s19 = int_to_ptr.vmem [resolvable:$true] %s18
      %24 = dma.hbm_to_vmem [thread:$0]  %s0, 1024, %s19, [#allocation3], 128, 128, 8
    $region5: #{tpu_custom_call.1} parent=1 // pred_fallthru
      _
    // Predicated region
    $region6: #{tpu_custom_call.1} parent=1 // pred_check
      _
    $region7: #{tpu_custom_call.1} parent=1 // pred_check_branch
      %26 = sbr.rel (0) target = $region9
    $region8: #{tpu_custom_call.1} parent=1 // pred_region
      %s28 = ssub.s32 512, 512
      %29 = vsyncadd [#allocation6], %s28
      %s30 = sshll.u32 [#allocation5], 4
      %s31 = int_to_ptr.vmem [resolvable:$true] %s30
      %36 = dma.hbm_to_vmem [thread:$0]  %s1, 512, %s31, [#allocation6], 128, 128, 8
    $region9: #{tpu_custom_call.1} parent=1 // pred_fallthru
      _
    // Predicated region
    $region10: #{tpu_custom_call.1} parent=1 // pred_check
      _
    $region11: #{tpu_custom_call.1} parent=1 // pred_check_branch
      %38 = sbr.rel (0) target = $region13
    $region12: #{tpu_custom_call.1} parent=1 // pred_region
      %39 = dma.done [#allocation3], 1024
    $region13: #{tpu_custom_call.1} parent=1 // pred_fallthru
      _
    // Predicated region
    $region14: #{tpu_custom_call.1} parent=1 // pred_check
      _
    $region15: #{tpu_custom_call.1} parent=1 // pred_check_branch
      %41 = sbr.rel (0) target = $region17
    $region16: #{tpu_custom_call.1} parent=1 // pred_region
      %42 = dma.done [#allocation6], 512
    $region17: #{tpu_custom_call.1} parent=1 // pred_fallthru
      _
    %v43 = vlaneseq
    %v44 = vand.u32 %v43, 127
    %vm45 = vcmp.ge.s32.totalorder %v44, 64
    %vm46 = vcmp.lt.s32.totalorder %v44, 96
    %vm47 = vmand %vm45, %vm46
    %v48 = vld [vmem:[#allocation2] sm:$0xff]
    %v49 = vld [vmem:[#allocation5] sm:$0xff]
    %v50 = vld [vmem:[#allocation5 + $0x8] sm:$0xff]
    %v51 = vld [vmem:[#allocation5 + $0x10] sm:$0xff]
    %v52 = vld [vmem:[#allocation5 + $0x18] sm:$0xff]
    %vm53 = vcmask 261120
    %v55 = vsel %vm53, 0.0, 0
    %57 = vmatprep.subr.mxu0 0.0
    %58 = vmatpush1.msra.mxu0 %v49
    %59 = vmatprep.subr.mxu0 0.0
    %60 = vmatpush1.msra.mxu0 %v50
    %61 = vmatprep.subr.mxu0 0.0
    %62 = vmatpush1.msra.mxu0 %v51
    %63 = vmatprep.subr.mxu0 0.0
    %64 = vmatpush1.msra.mxu0 %v52
    %65 = vmatprep.subr.mxu0 0.0
    %66 = vmatpush1.msra.mxu0 0.0
    %67 = vmatprep.subr.mxu0 0.0
    %68 = vmatpush1.msra.mxu0 0.0
    %69 = vmatprep.subr.mxu0 0.0
    %70 = vmatpush1.msra.mxu0 0.0
    %71 = vmatprep.subr.mxu0 0.0
    %72 = vmatpush1.msra.mxu0 0.0
    %73 = vmatprep.subr.mxu0 0.0
    %74 = vmatpush1.msra.mxu0 0.0
    %75 = vmatprep.subr.mxu0 0.0
    %76 = vmatpush1.msra.mxu0 0.0
    %77 = vmatprep.subr.mxu0 0.0
    %78 = vmatpush1.msra.mxu0 0.0
    %79 = vmatprep.subr.mxu0 0.0
    %80 = vmatpush1.msra.mxu0 0.0
    %81 = vmatprep.subr.mxu0 0.0
    %82 = vmatpush1.msra.mxu0 0.0
    %83 = vmatprep.subr.mxu0 0.0
    %84 = vmatpush1.msra.mxu0 0.0
    %85 = vmatprep.subr.mxu0 0.0
    %86 = vmatpush1.msra.mxu0 0.0
    %87 = vmatprep.subr.mxu0 0.0
    %88 = vmatpush1.msra.mxu0 0.0
    %89 = vmatprep.subr.mxu0 0.0
    %90 = vmatpush1.msra.mxu0 0.0
    %91 = vmatprep.subr.mxu0 0.0
    %92 = vmatpush1.msra.mxu0 0.0
    %93 = vmatprep.subr.mxu0 0.0
    %94 = vmatpush1.msra.mxu0 0.0
    %95 = vmatprep.subr.mxu0 0.0
    %96 = vmatpush1.msra.mxu0 0.0
    %97 = vmatprep.subr.mxu0 0.0
    %98 = vmatpush1.msra.mxu0 0.0
    %99 = vmatprep.subr.mxu0 0.0
    %100 = vmatpush1.msra.mxu0 0.0
    %101 = vmatprep.subr.mxu0 0.0
    %102 = vmatpush1.msra.mxu0 0.0
    %103 = vmatprep.subr.mxu0 0.0
    %104 = vmatpush1.msra.mxu0 0.0
    %105 = vmatprep.subr.mxu0 0.0
    %106 = vmatpush1.msra.mxu0 0.0
    %107 = vmatprep.subr.mxu0 0.0
    %108 = vmatpush1.msra.mxu0 0.0
    %109 = vmatprep.subr.mxu0 0.0
    %110 = vmatpush1.msra.mxu0 0.0
    %111 = vmatprep.subr.mxu0 0.0
    %112 = vmatpush1.msra.mxu0 0.0
    %113 = vmatprep.subr.mxu0 0.0
    %114 = vmatpush1.msra.mxu0 0.0
    %115 = vmatprep.subr.mxu0 0.0
    %116 = vmatpush1.msra.mxu0 0.0
    %117 = vmatprep.subr.mxu0 0.0
    %118 = vmatpush1.msra.mxu0 0.0
    %119 = vmatprep.subr.mxu0 0.0
    %120 = vmatpush1.msra.mxu0 0.0
    %121 = vmatprep.mubr.f32.mxu0 0.0
    %122 = vmatmul.mubr.f32.gmra.mrb[0].mxu0 %v55
    %v123 = vpop.f32.mrb[0].mxu0
    %v124 = vadd.f32 0.0, %v123
    %v125 = vpop.f32.mrb[0].mxu0
    %126 = vdwg.mxu0
    %v127 = vadd.f32 %v48, %v124
    %v128 = vmul.f32 %v127, 0.5
    %v129 = vsel %vm47, %v127, %v128
    %v130 = vtanh.pop %v129
    %v131 = vadd.f32 %v130, 1.0
    %v132 = vmul.f32 %v131, 0.5
    %v133 = vsel %vm47, %v130, %v132
    %v134 = vmul.f32 %v133, 0.0
    %136 = vrot.lane.b32.xlu0 %v133, 64
    %v137 = vpop.permute.xlu0 %136
    %v139 = vmul.f32 %v133, %v137
    %141 = vrot.lane.b32.xlu0 %v139, 32
    %v142 = vpop.permute.xlu0 %141
    %v144 = vadd.f32 %v134, %v142
    %v145 = vtanh.pop %v144
    %147 = vrot.lane.b32.xlu0 %v145, 64
    %v148 = vpop.permute.xlu0 %147
    %v150 = vmul.f32 %v133, %v148
    %v151 = vld [vmem:[#allocation2 + $0x8] sm:$0xff]
    %153 = vrot.lane.b32.xlu0 %v150, 32
    %v154 = vpop.permute.xlu0 %153
    %v155 = vsel %vm53, %v154, 0
    %157 = vmatprep.subr.mxu0 0.0
    %158 = vmatpush1.msra.mxu0 %v49
    %159 = vmatprep.subr.mxu0 0.0
    %160 = vmatpush1.msra.mxu0 %v50
    %161 = vmatprep.subr.mxu0 0.0
    %162 = vmatpush1.msra.mxu0 %v51
    %163 = vmatprep.subr.mxu0 0.0
    %164 = vmatpush1.msra.mxu0 %v52
    %165 = vmatprep.subr.mxu0 0.0
    %166 = vmatpush1.msra.mxu0 0.0
    %167 = vmatprep.subr.mxu0 0.0
    %168 = vmatpush1.msra.mxu0 0.0
    %169 = vmatprep.subr.mxu0 0.0
    %170 = vmatpush1.msra.mxu0 0.0
    %171 = vmatprep.subr.mxu0 0.0
    %172 = vmatpush1.msra.mxu0 0.0
    %173 = vmatprep.subr.mxu0 0.0
    %174 = vmatpush1.msra.mxu0 0.0
    %175 = vmatprep.subr.mxu0 0.0
    %176 = vmatpush1.msra.mxu0 0.0
    %177 = vmatprep.subr.mxu0 0.0
    %178 = vmatpush1.msra.mxu0 0.0
    %179 = vmatprep.subr.mxu0 0.0
    %180 = vmatpush1.msra.mxu0 0.0
    %181 = vmatprep.subr.mxu0 0.0
    %182 = vmatpush1.msra.mxu0 0.0
    %183 = vmatprep.subr.mxu0 0.0
    %184 = vmatpush1.msra.mxu0 0.0
    %185 = vmatprep.subr.mxu0 0.0
    %186 = vmatpush1.msra.mxu0 0.0
    %187 = vmatprep.subr.mxu0 0.0
    %188 = vmatpush1.msra.mxu0 0.0
    %189 = vmatprep.subr.mxu0 0.0
    %190 = vmatpush1.msra.mxu0 0.0
    %191 = vmatprep.subr.mxu0 0.0
    %192 = vmatpush1.msra.mxu0 0.0
    %193 = vmatprep.subr.mxu0 0.0
    %194 = vmatpush1.msra.mxu0 0.0
    %195 = vmatprep.subr.mxu0 0.0
    %196 = vmatpush1.msra.mxu0 0.0
    %197 = vmatprep.subr.mxu0 0.0
    %198 = vmatpush1.msra.mxu0 0.0
    %199 = vmatprep.subr.mxu0 0.0
    %200 = vmatpush1.msra.mxu0 0.0
    %201 = vmatprep.subr.mxu0 0.0
    %202 = vmatpush1.msra.mxu0 0.0
    %203 = vmatprep.subr.mxu0 0.0
    %204 = vmatpush1.msra.mxu0 0.0
    %205 = vmatprep.subr.mxu0 0.0
    %206 = vmatpush1.msra.mxu0 0.0
    %207 = vmatprep.subr.mxu0 0.0
    %208 = vmatpush1.msra.mxu0 0.0
    %209 = vmatprep.subr.mxu0 0.0
    %210 = vmatpush1.msra.mxu0 0.0
    %211 = vmatprep.subr.mxu0 0.0
    %212 = vmatpush1.msra.mxu0 0.0
    %213 = vmatprep.subr.mxu0 0.0
    %214 = vmatpush1.msra.mxu0 0.0
    %215 = vmatprep.subr.mxu0 0.0
    %216 = vmatpush1.msra.mxu0 0.0
    %217 = vmatprep.subr.mxu0 0.0
    %218 = vmatpush1.msra.mxu0 0.0
    %219 = vmatprep.subr.mxu0 0.0
    %220 = vmatpush1.msra.mxu0 0.0
    %221 = vmatprep.mubr.f32.mxu0 0.0
    %222 = vmatmul.mubr.f32.gmra.mrb[0].mxu0 %v155
    %v223 = vpop.f32.mrb[0].mxu0
    %v224 = vadd.f32 0.0, %v223
    %v225 = vpop.f32.mrb[0].mxu0
    %226 = vdwg.mxu0
    %v227 = vadd.f32 %v151, %v224
    %v228 = vmul.f32 %v227, 0.5
    %v229 = vsel %vm47, %v227, %v228
    %v230 = vtanh.pop %v229
    %v231 = vadd.f32 %v230, 1.0
    %v232 = vmul.f32 %v231, 0.5
    %v233 = vsel %vm47, %v230, %v232
    %v234 = vmul.f32 %v233, %v144
    %236 = vrot.lane.b32.xlu0 %v233, 64
    %v237 = vpop.permute.xlu0 %236
    %v239 = vmul.f32 %v233, %v237
    %241 = vrot.lane.b32.xlu0 %v239, 32
    %v242 = vpop.permute.xlu0 %241
    %v244 = vadd.f32 %v234, %v242
    %v245 = vtanh.pop %v244
    %247 = vrot.lane.b32.xlu0 %v245, 64
    %v248 = vpop.permute.xlu0 %247
    %v250 = vmul.f32 %v233, %v248
    %v251 = vld [vmem:[#allocation2 + $0x10] sm:$0xff]
    %253 = vrot.lane.b32.xlu0 %v250, 32
    %v254 = vpop.permute.xlu0 %253
    %v255 = vsel %vm53, %v254, 0
    %257 = vmatprep.subr.mxu0 0.0
    %258 = vmatpush1.msra.mxu0 %v49
    %259 = vmatprep.subr.mxu0 0.0
    %260 = vmatpush1.msra.mxu0 %v50
    %261 = vmatprep.subr.mxu0 0.0
    %262 = vmatpush1.msra.mxu0 %v51
    %263 = vmatprep.subr.mxu0 0.0
    %264 = vmatpush1.msra.mxu0 %v52
    %265 = vmatprep.subr.mxu0 0.0
    %266 = vmatpush1.msra.mxu0 0.0
    %267 = vmatprep.subr.mxu0 0.0
    %268 = vmatpush1.msra.mxu0 0.0
    %269 = vmatprep.subr.mxu0 0.0
    %270 = vmatpush1.msra.mxu0 0.0
    %271 = vmatprep.subr.mxu0 0.0
    %272 = vmatpush1.msra.mxu0 0.0
    %273 = vmatprep.subr.mxu0 0.0
    %274 = vmatpush1.msra.mxu0 0.0
    %275 = vmatprep.subr.mxu0 0.0
    %276 = vmatpush1.msra.mxu0 0.0
    %277 = vmatprep.subr.mxu0 0.0
    %278 = vmatpush1.msra.mxu0 0.0
    %279 = vmatprep.subr.mxu0 0.0
    %280 = vmatpush1.msra.mxu0 0.0
    %281 = vmatprep.subr.mxu0 0.0
    %282 = vmatpush1.msra.mxu0 0.0
    %283 = vmatprep.subr.mxu0 0.0
    %284 = vmatpush1.msra.mxu0 0.0
    %285 = vmatprep.subr.mxu0 0.0
    %286 = vmatpush1.msra.mxu0 0.0
    %287 = vmatprep.subr.mxu0 0.0
    %288 = vmatpush1.msra.mxu0 0.0
    %289 = vmatprep.subr.mxu0 0.0
    %290 = vmatpush1.msra.mxu0 0.0
    %291 = vmatprep.subr.mxu0 0.0
    %292 = vmatpush1.msra.mxu0 0.0
    %293 = vmatprep.subr.mxu0 0.0
    %294 = vmatpush1.msra.mxu0 0.0
    %295 = vmatprep.subr.mxu0 0.0
    %296 = vmatpush1.msra.mxu0 0.0
    %297 = vmatprep.subr.mxu0 0.0
    %298 = vmatpush1.msra.mxu0 0.0
    %299 = vmatprep.subr.mxu0 0.0
    %300 = vmatpush1.msra.mxu0 0.0
    %301 = vmatprep.subr.mxu0 0.0
    %302 = vmatpush1.msra.mxu0 0.0
    %303 = vmatprep.subr.mxu0 0.0
    %304 = vmatpush1.msra.mxu0 0.0
    %305 = vmatprep.subr.mxu0 0.0
    %306 = vmatpush1.msra.mxu0 0.0
    %307 = vmatprep.subr.mxu0 0.0
    %308 = vmatpush1.msra.mxu0 0.0
    %309 = vmatprep.subr.mxu0 0.0
    %310 = vmatpush1.msra.mxu0 0.0
    %311 = vmatprep.subr.mxu0 0.0
    %312 = vmatpush1.msra.mxu0 0.0
    %313 = vmatprep.subr.mxu0 0.0
    %314 = vmatpush1.msra.mxu0 0.0
    %315 = vmatprep.subr.mxu0 0.0
    %316 = vmatpush1.msra.mxu0 0.0
    %317 = vmatprep.subr.mxu0 0.0
    %318 = vmatpush1.msra.mxu0 0.0
    %319 = vmatprep.subr.mxu0 0.0
    %320 = vmatpush1.msra.mxu0 0.0
    %321 = vmatprep.mubr.f32.mxu0 0.0
    %322 = vmatmul.mubr.f32.gmra.mrb[0].mxu0 %v255
    %v323 = vpop.f32.mrb[0].mxu0
    %v324 = vadd.f32 0.0, %v323
    %v325 = vpop.f32.mrb[0].mxu0
    %326 = vdwg.mxu0
    %v327 = vadd.f32 %v251, %v324
    %v328 = vmul.f32 %v327, 0.5
    %v329 = vsel %vm47, %v327, %v328
    %v330 = vtanh.pop %v329
    %v331 = vadd.f32 %v330, 1.0
    %v332 = vmul.f32 %v331, 0.5
    %v333 = vsel %vm47, %v330, %v332
    %v334 = vmul.f32 %v333, %v244
    %336 = vrot.lane.b32.xlu0 %v333, 64
    %v337 = vpop.permute.xlu0 %336
    %v339 = vmul.f32 %v333, %v337
    %341 = vrot.lane.b32.xlu0 %v339, 32
    %v342 = vpop.permute.xlu0 %341
    %v344 = vadd.f32 %v334, %v342
    %v345 = vtanh.pop %v344
    %347 = vrot.lane.b32.xlu0 %v345, 64
    %v348 = vpop.permute.xlu0 %347
    %v350 = vmul.f32 %v333, %v348
    %v351 = vld [vmem:[#allocation2 + $0x18] sm:$0xff]
    %353 = vrot.lane.b32.xlu0 %v350, 32
    %v354 = vpop.permute.xlu0 %353
    %v355 = vsel %vm53, %v354, 0
    %357 = vmatprep.subr.mxu0 0.0
    %358 = vmatpush1.msra.mxu0 %v49
    %359 = vmatprep.subr.mxu0 0.0
    %360 = vmatpush1.msra.mxu0 %v50
    %361 = vmatprep.subr.mxu0 0.0
    %362 = vmatpush1.msra.mxu0 %v51
    %363 = vmatprep.subr.mxu0 0.0
    %364 = vmatpush1.msra.mxu0 %v52
    %365 = vmatprep.subr.mxu0 0.0
    %366 = vmatpush1.msra.mxu0 0.0
    %367 = vmatprep.subr.mxu0 0.0
    %368 = vmatpush1.msra.mxu0 0.0
    %369 = vmatprep.subr.mxu0 0.0
    %370 = vmatpush1.msra.mxu0 0.0
    %371 = vmatprep.subr.mxu0 0.0
    %372 = vmatpush1.msra.mxu0 0.0
    %373 = vmatprep.subr.mxu0 0.0
    %374 = vmatpush1.msra.mxu0 0.0
    %375 = vmatprep.subr.mxu0 0.0
    %376 = vmatpush1.msra.mxu0 0.0
    %377 = vmatprep.subr.mxu0 0.0
    %378 = vmatpush1.msra.mxu0 0.0
    %379 = vmatprep.subr.mxu0 0.0
    %380 = vmatpush1.msra.mxu0 0.0
    %381 = vmatprep.subr.mxu0 0.0
    %382 = vmatpush1.msra.mxu0 0.0
    %383 = vmatprep.subr.mxu0 0.0
    %384 = vmatpush1.msra.mxu0 0.0
    %385 = vmatprep.subr.mxu0 0.0
    %386 = vmatpush1.msra.mxu0 0.0
    %387 = vmatprep.subr.mxu0 0.0
    %388 = vmatpush1.msra.mxu0 0.0
    %389 = vmatprep.subr.mxu0 0.0
    %390 = vmatpush1.msra.mxu0 0.0
    %391 = vmatprep.subr.mxu0 0.0
    %392 = vmatpush1.msra.mxu0 0.0
    %393 = vmatprep.subr.mxu0 0.0
    %394 = vmatpush1.msra.mxu0 0.0
    %395 = vmatprep.subr.mxu0 0.0
    %396 = vmatpush1.msra.mxu0 0.0
    %397 = vmatprep.subr.mxu0 0.0
    %398 = vmatpush1.msra.mxu0 0.0
    %399 = vmatprep.subr.mxu0 0.0
    %400 = vmatpush1.msra.mxu0 0.0
    %401 = vmatprep.subr.mxu0 0.0
    %402 = vmatpush1.msra.mxu0 0.0
    %403 = vmatprep.subr.mxu0 0.0
    %404 = vmatpush1.msra.mxu0 0.0
    %405 = vmatprep.subr.mxu0 0.0
    %406 = vmatpush1.msra.mxu0 0.0
    %407 = vmatprep.subr.mxu0 0.0
    %408 = vmatpush1.msra.mxu0 0.0
    %409 = vmatprep.subr.mxu0 0.0
    %410 = vmatpush1.msra.mxu0 0.0
    %411 = vmatprep.subr.mxu0 0.0
    %412 = vmatpush1.msra.mxu0 0.0
    %413 = vmatprep.subr.mxu0 0.0
    %414 = vmatpush1.msra.mxu0 0.0
    %415 = vmatprep.subr.mxu0 0.0
    %416 = vmatpush1.msra.mxu0 0.0
    %417 = vmatprep.subr.mxu0 0.0
    %418 = vmatpush1.msra.mxu0 0.0
    %419 = vmatprep.subr.mxu0 0.0
    %420 = vmatpush1.msra.mxu0 0.0
    %421 = vmatprep.mubr.f32.mxu0 0.0
    %422 = vmatmul.mubr.f32.gmra.mrb[0].mxu0 %v355
    %v423 = vpop.f32.mrb[0].mxu0
    %v424 = vadd.f32 0.0, %v423
    %v425 = vpop.f32.mrb[0].mxu0
    %426 = vdwg.mxu0
    %v427 = vadd.f32 %v351, %v424
    %v428 = vmul.f32 %v427, 0.5
    %v429 = vsel %vm47, %v427, %v428
    %v430 = vtanh.pop %v429
    %v431 = vadd.f32 %v430, 1.0
    %v432 = vmul.f32 %v431, 0.5
    %v433 = vsel %vm47, %v430, %v432
    %v434 = vmul.f32 %v433, %v344
    %436 = vrot.lane.b32.xlu0 %v433, 64
    %v437 = vpop.permute.xlu0 %436
    %v439 = vmul.f32 %v433, %v437
    %441 = vrot.lane.b32.xlu0 %v439, 32
    %v442 = vpop.permute.xlu0 %441
    %v444 = vadd.f32 %v434, %v442
    %v445 = vtanh.pop %v444
    %447 = vrot.lane.b32.xlu0 %v445, 64
    %v448 = vpop.permute.xlu0 %447
    %v450 = vmul.f32 %v433, %v448
    %v451 = vld [vmem:[#allocation2 + $0x20] sm:$0xff]
    %453 = vrot.lane.b32.xlu0 %v450, 32
    %v454 = vpop.permute.xlu0 %453
    %v455 = vsel %vm53, %v454, 0
    %457 = vmatprep.subr.mxu0 0.0
    %458 = vmatpush1.msra.mxu0 %v49
    %459 = vmatprep.subr.mxu0 0.0
    %460 = vmatpush1.msra.mxu0 %v50
    %461 = vmatprep.subr.mxu0 0.0
    %462 = vmatpush1.msra.mxu0 %v51
    %463 = vmatprep.subr.mxu0 0.0
    %464 = vmatpush1.msra.mxu0 %v52
    %465 = vmatprep.subr.mxu0 0.0
    %466 = vmatpush1.msra.mxu0 0.0
    %467 = vmatprep.subr.mxu0 0.0
    %468 = vmatpush1.msra.mxu0 0.0
    %469 = vmatprep.subr.mxu0 0.0
    %470 = vmatpush1.msra.mxu0 0.0
    %471 = vmatprep.subr.mxu0 0.0
    %472 = vmatpush1.msra.mxu0 0.0
    %473 = vmatprep.subr.mxu0 0.0
    %474 = vmatpush1.msra.mxu0 0.0
    %475 = vmatprep.subr.mxu0 0.0
    %476 = vmatpush1.msra.mxu0 0.0
    %477 = vmatprep.subr.mxu0 0.0
    %478 = vmatpush1.msra.mxu0 0.0
    %479 = vmatprep.subr.mxu0 0.0
    %480 = vmatpush1.msra.mxu0 0.0
    %481 = vmatprep.subr.mxu0 0.0
    %482 = vmatpush1.msra.mxu0 0.0
    %483 = vmatprep.subr.mxu0 0.0
    %484 = vmatpush1.msra.mxu0 0.0
    %485 = vmatprep.subr.mxu0 0.0
    %486 = vmatpush1.msra.mxu0 0.0
    %487 = vmatprep.subr.mxu0 0.0
    %488 = vmatpush1.msra.mxu0 0.0
    %489 = vmatprep.subr.mxu0 0.0
    %490 = vmatpush1.msra.mxu0 0.0
    %491 = vmatprep.subr.mxu0 0.0
    %492 = vmatpush1.msra.mxu0 0.0
    %493 = vmatprep.subr.mxu0 0.0
    %494 = vmatpush1.msra.mxu0 0.0
    %495 = vmatprep.subr.mxu0 0.0
    %496 = vmatpush1.msra.mxu0 0.0
    %497 = vmatprep.subr.mxu0 0.0
    %498 = vmatpush1.msra.mxu0 0.0
    %499 = vmatprep.subr.mxu0 0.0
    %500 = vmatpush1.msra.mxu0 0.0
    %501 = vmatprep.subr.mxu0 0.0
    %502 = vmatpush1.msra.mxu0 0.0
    %503 = vmatprep.subr.mxu0 0.0
    %504 = vmatpush1.msra.mxu0 0.0
    %505 = vmatprep.subr.mxu0 0.0
    %506 = vmatpush1.msra.mxu0 0.0
    %507 = vmatprep.subr.mxu0 0.0
    %508 = vmatpush1.msra.mxu0 0.0
    %509 = vmatprep.subr.mxu0 0.0
    %510 = vmatpush1.msra.mxu0 0.0
    %511 = vmatprep.subr.mxu0 0.0
    %512 = vmatpush1.msra.mxu0 0.0
    %513 = vmatprep.subr.mxu0 0.0
    %514 = vmatpush1.msra.mxu0 0.0
    %515 = vmatprep.subr.mxu0 0.0
    %516 = vmatpush1.msra.mxu0 0.0
    %517 = vmatprep.subr.mxu0 0.0
    %518 = vmatpush1.msra.mxu0 0.0
    %519 = vmatprep.subr.mxu0 0.0
    %520 = vmatpush1.msra.mxu0 0.0
    %521 = vmatprep.mubr.f32.mxu0 0.0
    %522 = vmatmul.mubr.f32.gmra.mrb[0].mxu0 %v455
    %v523 = vpop.f32.mrb[0].mxu0
    %v524 = vadd.f32 0.0, %v523
    %v525 = vpop.f32.mrb[0].mxu0
    %526 = vdwg.mxu0
    %v527 = vadd.f32 %v451, %v524
    %v528 = vmul.f32 %v527, 0.5
    %v529 = vsel %vm47, %v527, %v528
    %v530 = vtanh.pop %v529
    %v531 = vadd.f32 %v530, 1.0
    %v532 = vmul.f32 %v531, 0.5
    %v533 = vsel %vm47, %v530, %v532
    %v534 = vmul.f32 %v533, %v444
    %536 = vrot.lane.b32.xlu0 %v533, 64
    %v537 = vpop.permute.xlu0 %536
    %v539 = vmul.f32 %v533, %v537
    %541 = vrot.lane.b32.xlu0 %v539, 32
    %v542 = vpop.permute.xlu0 %541
    %v544 = vadd.f32 %v534, %v542
    %v545 = vtanh.pop %v544
    %547 = vrot.lane.b32.xlu0 %v545, 64
    %v548 = vpop.permute.xlu0 %547
    %v550 = vmul.f32 %v533, %v548
    %v551 = vld [vmem:[#allocation2 + $0x28] sm:$0xff]
    %553 = vrot.lane.b32.xlu0 %v550, 32
    %v554 = vpop.permute.xlu0 %553
    %v555 = vsel %vm53, %v554, 0
    %557 = vmatprep.subr.mxu0 0.0
    %558 = vmatpush1.msra.mxu0 %v49
    %559 = vmatprep.subr.mxu0 0.0
    %560 = vmatpush1.msra.mxu0 %v50
    %561 = vmatprep.subr.mxu0 0.0
    %562 = vmatpush1.msra.mxu0 %v51
    %563 = vmatprep.subr.mxu0 0.0
    %564 = vmatpush1.msra.mxu0 %v52
    %565 = vmatprep.subr.mxu0 0.0
    %566 = vmatpush1.msra.mxu0 0.0
    %567 = vmatprep.subr.mxu0 0.0
    %568 = vmatpush1.msra.mxu0 0.0
    %569 = vmatprep.subr.mxu0 0.0
    %570 = vmatpush1.msra.mxu0 0.0
    %571 = vmatprep.subr.mxu0 0.0
    %572 = vmatpush1.msra.mxu0 0.0
    %573 = vmatprep.subr.mxu0 0.0
    %574 = vmatpush1.msra.mxu0 0.0
    %575 = vmatprep.subr.mxu0 0.0
    %576 = vmatpush1.msra.mxu0 0.0
    %577 = vmatprep.subr.mxu0 0.0
    %578 = vmatpush1.msra.mxu0 0.0
    %579 = vmatprep.subr.mxu0 0.0
    %580 = vmatpush1.msra.mxu0 0.0
    %581 = vmatprep.subr.mxu0 0.0
    %582 = vmatpush1.msra.mxu0 0.0
    %583 = vmatprep.subr.mxu0 0.0
    %584 = vmatpush1.msra.mxu0 0.0
    %585 = vmatprep.subr.mxu0 0.0
    %586 = vmatpush1.msra.mxu0 0.0
    %587 = vmatprep.subr.mxu0 0.0
    %588 = vmatpush1.msra.mxu0 0.0
    %589 = vmatprep.subr.mxu0 0.0
    %590 = vmatpush1.msra.mxu0 0.0
    %591 = vmatprep.subr.mxu0 0.0
    %592 = vmatpush1.msra.mxu0 0.0
    %593 = vmatprep.subr.mxu0 0.0
    %594 = vmatpush1.msra.mxu0 0.0
    %595 = vmatprep.subr.mxu0 0.0
    %596 = vmatpush1.msra.mxu0 0.0
    %597 = vmatprep.subr.mxu0 0.0
    %598 = vmatpush1.msra.mxu0 0.0
    %599 = vmatprep.subr.mxu0 0.0
    %600 = vmatpush1.msra.mxu0 0.0
    %601 = vmatprep.subr.mxu0 0.0
    %602 = vmatpush1.msra.mxu0 0.0
    %603 = vmatprep.subr.mxu0 0.0
    %604 = vmatpush1.msra.mxu0 0.0
    %605 = vmatprep.subr.mxu0 0.0
    %606 = vmatpush1.msra.mxu0 0.0
    %607 = vmatprep.subr.mxu0 0.0
    %608 = vmatpush1.msra.mxu0 0.0
    %609 = vmatprep.subr.mxu0 0.0
    %610 = vmatpush1.msra.mxu0 0.0
    %611 = vmatprep.subr.mxu0 0.0
    %612 = vmatpush1.msra.mxu0 0.0
    %613 = vmatprep.subr.mxu0 0.0
    %614 = vmatpush1.msra.mxu0 0.0
    %615 = vmatprep.subr.mxu0 0.0
    %616 = vmatpush1.msra.mxu0 0.0
    %617 = vmatprep.subr.mxu0 0.0
    %618 = vmatpush1.msra.mxu0 0.0
    %619 = vmatprep.subr.mxu0 0.0
    %620 = vmatpush1.msra.mxu0 0.0
    %621 = vmatprep.mubr.f32.mxu0 0.0
    %622 = vmatmul.mubr.f32.gmra.mrb[0].mxu0 %v555
    %v623 = vpop.f32.mrb[0].mxu0
    %v624 = vadd.f32 0.0, %v623
    %v625 = vpop.f32.mrb[0].mxu0
    %626 = vdwg.mxu0
    %v627 = vadd.f32 %v551, %v624
    %v628 = vmul.f32 %v627, 0.5
    %v629 = vsel %vm47, %v627, %v628
    %v630 = vtanh.pop %v629
    %v631 = vadd.f32 %v630, 1.0
    %v632 = vmul.f32 %v631, 0.5
    %v633 = vsel %vm47, %v630, %v632
    %v634 = vmul.f32 %v633, %v544
    %636 = vrot.lane.b32.xlu0 %v633, 64
    %v637 = vpop.permute.xlu0 %636
    %v639 = vmul.f32 %v633, %v637
    %641 = vrot.lane.b32.xlu0 %v639, 32
    %v642 = vpop.permute.xlu0 %641
    %v644 = vadd.f32 %v634, %v642
    %v645 = vtanh.pop %v644
    %647 = vrot.lane.b32.xlu0 %v645, 64
    %v648 = vpop.permute.xlu0 %647
    %v650 = vmul.f32 %v633, %v648
    %v651 = vld [vmem:[#allocation2 + $0x30] sm:$0xff]
    %653 = vrot.lane.b32.xlu0 %v650, 32
    %v654 = vpop.permute.xlu0 %653
    %v655 = vsel %vm53, %v654, 0
    %657 = vmatprep.subr.mxu0 0.0
    %658 = vmatpush1.msra.mxu0 %v49
    %659 = vmatprep.subr.mxu0 0.0
    %660 = vmatpush1.msra.mxu0 %v50
    %661 = vmatprep.subr.mxu0 0.0
    %662 = vmatpush1.msra.mxu0 %v51
    %663 = vmatprep.subr.mxu0 0.0
    %664 = vmatpush1.msra.mxu0 %v52
    %665 = vmatprep.subr.mxu0 0.0
    %666 = vmatpush1.msra.mxu0 0.0
    %667 = vmatprep.subr.mxu0 0.0
    %668 = vmatpush1.msra.mxu0 0.0
    %669 = vmatprep.subr.mxu0 0.0
    %670 = vmatpush1.msra.mxu0 0.0
    %671 = vmatprep.subr.mxu0 0.0
    %672 = vmatpush1.msra.mxu0 0.0
    %673 = vmatprep.subr.mxu0 0.0
    %674 = vmatpush1.msra.mxu0 0.0
    %675 = vmatprep.subr.mxu0 0.0
    %676 = vmatpush1.msra.mxu0 0.0
    %677 = vmatprep.subr.mxu0 0.0
    %678 = vmatpush1.msra.mxu0 0.0
    %679 = vmatprep.subr.mxu0 0.0
    %680 = vmatpush1.msra.mxu0 0.0
    %681 = vmatprep.subr.mxu0 0.0
    %682 = vmatpush1.msra.mxu0 0.0
    %683 = vmatprep.subr.mxu0 0.0
    %684 = vmatpush1.msra.mxu0 0.0
    %685 = vmatprep.subr.mxu0 0.0
    %686 = vmatpush1.msra.mxu0 0.0
    %687 = vmatprep.subr.mxu0 0.0
    %688 = vmatpush1.msra.mxu0 0.0
    %689 = vmatprep.subr.mxu0 0.0
    %690 = vmatpush1.msra.mxu0 0.0
    %691 = vmatprep.subr.mxu0 0.0
    %692 = vmatpush1.msra.mxu0 0.0
    %693 = vmatprep.subr.mxu0 0.0
    %694 = vmatpush1.msra.mxu0 0.0
    %695 = vmatprep.subr.mxu0 0.0
    %696 = vmatpush1.msra.mxu0 0.0
    %697 = vmatprep.subr.mxu0 0.0
    %698 = vmatpush1.msra.mxu0 0.0
    %699 = vmatprep.subr.mxu0 0.0
    %700 = vmatpush1.msra.mxu0 0.0
    %701 = vmatprep.subr.mxu0 0.0
    %702 = vmatpush1.msra.mxu0 0.0
    %703 = vmatprep.subr.mxu0 0.0
    %704 = vmatpush1.msra.mxu0 0.0
    %705 = vmatprep.subr.mxu0 0.0
    %706 = vmatpush1.msra.mxu0 0.0
    %707 = vmatprep.subr.mxu0 0.0
    %708 = vmatpush1.msra.mxu0 0.0
    %709 = vmatprep.subr.mxu0 0.0
    %710 = vmatpush1.msra.mxu0 0.0
    %711 = vmatprep.subr.mxu0 0.0
    %712 = vmatpush1.msra.mxu0 0.0
    %713 = vmatprep.subr.mxu0 0.0
    %714 = vmatpush1.msra.mxu0 0.0
    %715 = vmatprep.subr.mxu0 0.0
    %716 = vmatpush1.msra.mxu0 0.0
    %717 = vmatprep.subr.mxu0 0.0
    %718 = vmatpush1.msra.mxu0 0.0
    %719 = vmatprep.subr.mxu0 0.0
    %720 = vmatpush1.msra.mxu0 0.0
    %721 = vmatprep.mubr.f32.mxu0 0.0
    %722 = vmatmul.mubr.f32.gmra.mrb[0].mxu0 %v655
    %v723 = vpop.f32.mrb[0].mxu0
    %v724 = vadd.f32 0.0, %v723
    %v725 = vpop.f32.mrb[0].mxu0
    %726 = vdwg.mxu0
    %v727 = vadd.f32 %v651, %v724
    %v728 = vmul.f32 %v727, 0.5
    %v729 = vsel %vm47, %v727, %v728
    %v730 = vtanh.pop %v729
    %v731 = vadd.f32 %v730, 1.0
    %v732 = vmul.f32 %v731, 0.5
    %v733 = vsel %vm47, %v730, %v732
    %v734 = vmul.f32 %v733, %v644
    %736 = vrot.lane.b32.xlu0 %v733, 64
    %v737 = vpop.permute.xlu0 %736
    %v739 = vmul.f32 %v733, %v737
    %741 = vrot.lane.b32.xlu0 %v739, 32
    %v742 = vpop.permute.xlu0 %741
    %v744 = vadd.f32 %v734, %v742
    %v745 = vtanh.pop %v744
    %747 = vrot.lane.b32.xlu0 %v745, 64
    %v748 = vpop.permute.xlu0 %747
    %v750 = vmul.f32 %v733, %v748
    %v751 = vld [vmem:[#allocation2 + $0x38] sm:$0xff]
    %753 = vrot.lane.b32.xlu0 %v750, 32
    %v754 = vpop.permute.xlu0 %753
    %v755 = vsel %vm53, %v754, 0
    %757 = vmatprep.subr.mxu0 0.0
    %758 = vmatpush1.msra.mxu0 %v49
    %759 = vmatprep.subr.mxu0 0.0
    %760 = vmatpush1.msra.mxu0 %v50
    %761 = vmatprep.subr.mxu0 0.0
    %762 = vmatpush1.msra.mxu0 %v51
    %763 = vmatprep.subr.mxu0 0.0
    %764 = vmatpush1.msra.mxu0 %v52
    %765 = vmatprep.subr.mxu0 0.0
    %766 = vmatpush1.msra.mxu0 0.0
    %767 = vmatprep.subr.mxu0 0.0
    %768 = vmatpush1.msra.mxu0 0.0
    %769 = vmatprep.subr.mxu0 0.0
    %770 = vmatpush1.msra.mxu0 0.0
    %771 = vmatprep.subr.mxu0 0.0
    %772 = vmatpush1.msra.mxu0 0.0
    %773 = vmatprep.subr.mxu0 0.0
    %774 = vmatpush1.msra.mxu0 0.0
    %775 = vmatprep.subr.mxu0 0.0
    %776 = vmatpush1.msra.mxu0 0.0
    %777 = vmatprep.subr.mxu0 0.0
    %778 = vmatpush1.msra.mxu0 0.0
    %779 = vmatprep.subr.mxu0 0.0
    %780 = vmatpush1.msra.mxu0 0.0
    %781 = vmatprep.subr.mxu0 0.0
    %782 = vmatpush1.msra.mxu0 0.0
    %783 = vmatprep.subr.mxu0 0.0
    %784 = vmatpush1.msra.mxu0 0.0
    %785 = vmatprep.subr.mxu0 0.0
    %786 = vmatpush1.msra.mxu0 0.0
    %787 = vmatprep.subr.mxu0 0.0
    %788 = vmatpush1.msra.mxu0 0.0
    %789 = vmatprep.subr.mxu0 0.0
    %790 = vmatpush1.msra.mxu0 0.0
    %791 = vmatprep.subr.mxu0 0.0
    %792 = vmatpush1.msra.mxu0 0.0
    %793 = vmatprep.subr.mxu0 0.0
    %794 = vmatpush1.msra.mxu0 0.0
    %795 = vmatprep.subr.mxu0 0.0
    %796 = vmatpush1.msra.mxu0 0.0
    %797 = vmatprep.subr.mxu0 0.0
    %798 = vmatpush1.msra.mxu0 0.0
    %799 = vmatprep.subr.mxu0 0.0
    %800 = vmatpush1.msra.mxu0 0.0
    %801 = vmatprep.subr.mxu0 0.0
    %802 = vmatpush1.msra.mxu0 0.0
    %803 = vmatprep.subr.mxu0 0.0
    %804 = vmatpush1.msra.mxu0 0.0
    %805 = vmatprep.subr.mxu0 0.0
    %806 = vmatpush1.msra.mxu0 0.0
    %807 = vmatprep.subr.mxu0 0.0
    %808 = vmatpush1.msra.mxu0 0.0
    %809 = vmatprep.subr.mxu0 0.0
    %810 = vmatpush1.msra.mxu0 0.0
    %811 = vmatprep.subr.mxu0 0.0
    %812 = vmatpush1.msra.mxu0 0.0
    %813 = vmatprep.subr.mxu0 0.0
    %814 = vmatpush1.msra.mxu0 0.0
    %815 = vmatprep.subr.mxu0 0.0
    %816 = vmatpush1.msra.mxu0 0.0
    %817 = vmatprep.subr.mxu0 0.0
    %818 = vmatpush1.msra.mxu0 0.0
    %819 = vmatprep.subr.mxu0 0.0
    %820 = vmatpush1.msra.mxu0 0.0
    %821 = vmatprep.mubr.f32.mxu0 0.0
    %822 = vmatmul.mubr.f32.gmra.mrb[0].mxu0 %v755
    %v823 = vpop.f32.mrb[0].mxu0
    %v824 = vadd.f32 0.0, %v823
    %v825 = vpop.f32.mrb[0].mxu0
    %826 = vdwg.mxu0
    %v827 = vadd.f32 %v751, %v824
    %v828 = vmul.f32 %v827, 0.5
    %v829 = vsel %vm47, %v827, %v828
    %v830 = vtanh.pop %v829
    %v831 = vadd.f32 %v830, 1.0
    %v832 = vmul.f32 %v831, 0.5
    %v833 = vsel %vm47, %v830, %v832
    %v834 = vmul.f32 %v833, %v744
    %836 = vrot.lane.b32.xlu0 %v833, 64
    %v837 = vpop.permute.xlu0 %836
    %v839 = vmul.f32 %v833, %v837
    %841 = vrot.lane.b32.xlu0 %v839, 32
    %v842 = vpop.permute.xlu0 %841
    %v844 = vadd.f32 %v834, %v842
    %v845 = vtanh.pop %v844
    %847 = vrot.lane.b32.xlu0 %v845, 64
    %v848 = vpop.permute.xlu0 %847
    %v850 = vmul.f32 %v833, %v848
    %852 = vrot.lane.b32.xlu0 %v850, 32
    %v853 = vpop.permute.xlu0 %852
    %855 = vst.msk [vmem:[#allocation7] sm:$0xff] %vm53, %v853
    %857 = vrot.lane.b32.xlu0 %v844, 96
    %v858 = vpop.permute.xlu0 %857
    %860 = vst.msk [vmem:[#allocation8] sm:$0xff] %vm53, %v858
    // Predicated region
    $region18: #{tpu_custom_call.1} parent=1 // pred_check
      _
    $region19: #{tpu_custom_call.1} parent=1 // pred_check_branch
      %862 = sbr.rel (0) target = $region21
    $region20: #{tpu_custom_call.1} parent=1 // pred_region
      %s864 = ssub.s32 128, 128
      %865 = vsyncadd [#allocation4], %s864
      %s867 = sshll.u32 [#allocation7], 4
      %s868 = int_to_ptr.vmem [resolvable:$true] %s867
      %870 = dma.vmem_to_hbm [thread:$0]  %s868, 128, %s2, [#allocation4]
    $region21: #{tpu_custom_call.1} parent=1 // pred_fallthru
      _
    // Predicated region
    $region22: #{tpu_custom_call.1} parent=1 // pred_check
      _
    $region23: #{tpu_custom_call.1} parent=1 // pred_check_branch
      %872 = sbr.rel (0) target = $region25
    $region24: #{tpu_custom_call.1} parent=1 // pred_region
      %s874 = ssub.s32 128, 128
      %875 = vsyncadd [#allocation9], %s874
      %s877 = sshll.u32 [#allocation8], 4
      %s878 = int_to_ptr.vmem [resolvable:$true] %s877
      %880 = dma.vmem_to_hbm [thread:$0]  %s878, 128, %s3, [#allocation9]
    $region25: #{tpu_custom_call.1} parent=1 // pred_fallthru
      _
    // Predicated region
    $region26: #{tpu_custom_call.1} parent=1 // pred_check
      _
    $region27: #{tpu_custom_call.1} parent=1 // pred_check_branch
      %882 = sbr.rel (0) target = $region29
    $region28: #{tpu_custom_call.1} parent=1 // pred_region
      %883 = dma.done [#allocation4], 128
    $region29: #{tpu_custom_call.1} parent=1 // pred_fallthru
      _
    // Predicated region
    $region30: #{tpu_custom_call.1} parent=1 // pred_check
      _
    $region31: #{tpu_custom_call.1} parent=1 // pred_check_branch
      %885 = sbr.rel (0) target = $region33
    $region32: #{tpu_custom_call.1} parent=1 // pred_region
      %886 = dma.done [#allocation9], 128
    $region33: #{tpu_custom_call.1} parent=1 // pred_fallthru
      _
    %887 = vsyncpa [#allocation3], 1
    %888 = vsyncpa [#allocation6], 1
    %889 = vsyncpa [#allocation4], 1
    %890 = vsyncpa [#allocation9], 1

</llo_original>
